<compile_context>
chip_gen: v5e
topology: v5e:2x2
jax: 0.10.0
libtpu: 0.0.40
codegen_flags: <defaults>
</compile_context>

<pallas_src>
import functools

import jax
import jax.numpy as jnp
from jax.experimental import pallas as pl
from jax.experimental.pallas import tpu as pltpu

KH = KW = 3          # kernel_size
STRIDE = 2
PAD = 1
LEAKY_SLOPE = 0.1
BN_EPS = 1e-5

# Phase (ph, pw) -> packed-channel block index.  This ordering makes every
# (row-shift, col-shift) tap group a CONTIGUOUS channel slice of the
# space-to-depth tensor:
#   group (oh=0, ow=0): blocks [0:4)    group (oh=0, ow=1): blocks [0:2)
#   group (oh=1, ow=0): blocks [1:3)    group (oh=1, ow=1): blocks [1:2)
_PHASE_ORDER = ((1, 0), (0, 0), (0, 1), (1, 1))

_LANE = 128
_VMEM_STEP_BUDGET = 20 * 1024 * 1024      # per-grid-step working-set target
_VMEM_LIMIT = 48 * 1024 * 1024            # <= v7x 64 MiB physical per TensorCore


def _conv_bn_lrelu_kernel(x_ref, halo_ref, wa_ref, wb_ref, wc_ref, wd_ref,
                          bias_ref, o_ref, *, tile_h, w_out, cin):
    # x_ref:    (tile_h, wp, 4*cin)    bf16  space-to-depth rows [t*tile_h, (t+1)*tile_h)
    # halo_ref: (wp, 4*cin)            bf16  space-to-depth row  (t+1)*tile_h
    # wa..wd:   (4c|2c|2c|c, tile_n)   bf16  per-tap-group conv weights (BN scale folded in)
    # bias_ref: (1, tile_n)            f32   folded BN bias
    # o_ref:    (tile_h*w_out, tile_n) bf16
    c1, c2, c3, c4 = cin, 2 * cin, 3 * cin, 4 * cin
    m_all = tile_h * w_out
    m_top = (tile_h - 1) * w_out
    f32 = jnp.float32
    bias = bias_ref[...]

    # ---- oh = 0 taps (kh in {0,1}): read this tile's own rows, all output rows ----
    p_a = x_ref[:, 0:w_out, :].reshape(m_all, c4)                  # (kh,kw) in {0,1}x{0,1}
    p_b = x_ref[:, 1:w_out + 1, 0:c2].reshape(m_all, c2)           # (kh,kw) in {0,1}x{2}
    acc = jnp.dot(p_a, wa_ref[...], preferred_element_type=f32)
    acc = acc + jnp.dot(p_b, wb_ref[...], preferred_element_type=f32)

    def _finish(v):
        y = v + bias                                               # BatchNorm (folded, eval)
        y = jnp.where(y > 0, y, LEAKY_SLOPE * y)                   # LeakyReLU(0.1), f32 math
        return y.astype(o_ref.dtype)

    # ---- oh = 1 taps (kh == 2): output row a reads s2d row a+1.  Rows 1..tile_h-1
    # come from this tile; the last output row reads the halo row. ----
    if tile_h > 1:
        q_c = x_ref[1:tile_h, 0:w_out, c1:c3].reshape(m_top, c2)       # (2,0),(2,1)
        q_d = x_ref[1:tile_h, 1:w_out + 1, c1:c2].reshape(m_top, c1)   # (2,2)
        acc_top = (acc[0:m_top]
                   + jnp.dot(q_c, wc_ref[...], preferred_element_type=f32)
                   + jnp.dot(q_d, wd_ref[...], preferred_element_type=f32))
        o_ref[0:m_top, :] = _finish(acc_top)

    h_c = halo_ref[0:w_out, c1:c3]
    h_d = halo_ref[1:w_out + 1, c1:c2]
    acc_bot = (acc[m_top:m_all]
               + jnp.dot(h_c, wc_ref[...], preferred_element_type=f32)
               + jnp.dot(h_d, wd_ref[...], preferred_element_type=f32))
    o_ref[m_top:m_all, :] = _finish(acc_bot)


def _pick_tile_h(h_out, w_out, wp, cin, tile_n):
    """Largest tile_h whose real per-step working set fits the VMEM budget."""
    c4 = 4 * cin

    def step_bytes(th):
        m = th * w_out
        in_blk = th * wp * c4 * 2                     # bf16 input row tile
        halo = wp * c4 * 2                            # bf16 halo row
        wts = 9 * cin * tile_n * 2 + tile_n * 4       # fused weight slabs + bias
        out_blk = m * tile_n * 2                      # bf16 output slab
        acc = m * tile_n * 4                          # f32 accumulator
        # 2x for double-buffered pipeline copies; extra 2x in_blk for tap slices.
        return 2 * (in_blk + halo + wts + out_blk) + 2 * acc + 2 * in_blk

    th = max(1, h_out)
    while th > 1 and step_bytes(th) > _VMEM_STEP_BUDGET:
        th -= 1
    if w_out % 8 != 0 and th >= 8:
        th -= th % 8                                  # keep tile_h*w_out a multiple of 8
    return max(1, th)


def basic_conv_2(x_nchw, weight_oihw, gamma, beta, run_mean, run_var, *, tile_h=None):
    n, cin, h, w = x_nchw.shape
    cout = weight_oihw.shape[0]

    h_out = (h + 2 * PAD - KH) // STRIDE + 1
    w_out = (w + 2 * PAD - KW) // STRIDE + 1
    hp = -(-(h + 2 * PAD) // STRIDE)
    wp = -(-(w + 2 * PAD) // STRIDE)

    # ---- fold BatchNorm (inference mode) into the conv weights + per-channel bias ----
    scale = gamma / jnp.sqrt(run_var + BN_EPS)                      # (cout,)
    bias = beta - run_mean * scale
    w_hwio = jnp.transpose(weight_oihw, (2, 3, 1, 0)) * scale       # (KH, KW, cin, cout)

    cout_p = -(-cout // _LANE) * _LANE                              # lane-dense stores
    tile_n = 256 if cout_p % 256 == 0 else _LANE
    n_j = cout_p // tile_n

    def slab(taps):
        m = jnp.concatenate([w_hwio[kh, kw] for kh, kw in taps], axis=0)
        m = jnp.pad(m, ((0, 0), (0, cout_p - cout)))
        return m.astype(jnp.bfloat16)

    # Per-(row-shift, col-shift) tap groups; row order matches the packed-channel slices.
    w_a = slab([(1, 0), (0, 0), (0, 1), (1, 1)])    # oh=0, ow=0   K = 4*cin
    w_b = slab([(1, 2), (0, 2)])                    # oh=0, ow=1   K = 2*cin
    w_c = slab([(2, 0), (2, 1)])                    # oh=1, ow=0   K = 2*cin
    w_d = slab([(2, 2)])                            # oh=1, ow=1   K = cin
    bias_p = jnp.pad(bias, (0, cout_p - cout)).reshape(1, cout_p).astype(jnp.float32)

    # ---- layout: NCHW -> NHWC bf16, zero-pad, space-to-depth (phases -> lanes) ----
    x = jnp.transpose(x_nchw.astype(jnp.bfloat16), (0, 2, 3, 1))
    x = jnp.pad(x, ((0, 0),
                    (PAD, STRIDE * hp - h - PAD),
                    (PAD, STRIDE * wp - w - PAD),
                    (0, 0)))
    s2d = jnp.concatenate(
        [x[:, ph::STRIDE, pw::STRIDE, :] for ph, pw in _PHASE_ORDER],
        axis=-1)                                                    # (n, hp, wp, 4*cin)

    if tile_h is None:
        tile_h = _pick_tile_h(h_out, w_out, wp, cin, tile_n)
    tile_h = max(1, min(int(tile_h), h_out))
    nt = -(-h_out // tile_h)
    rows_main = nt * tile_h
    if hp < rows_main + 1:
        s2d = jnp.pad(s2d, ((0, 0), (0, rows_main + 1 - hp), (0, 0), (0, 0)))
    # Non-overlapping row tiles + a tiny one-row-per-tile halo tensor (no jnp.stack
    # of the whole input => no extra full HBM pass).
    main = s2d[:, :rows_main]                                       # (n, nt*tile_h, wp, 4cin)
    halo = s2d[:, tile_h:rows_main + 1:tile_h]                      # (n, nt, wp, 4cin)

    c4 = 4 * cin
    m_all = tile_h * w_out
    kernel = functools.partial(_conv_bn_lrelu_kernel,
                               tile_h=tile_h, w_out=w_out, cin=cin)

    out = pl.pallas_call(
        kernel,
        out_shape=jax.ShapeDtypeStruct((n, nt, m_all, cout_p), jnp.bfloat16),
        grid=(n, nt, n_j),
        in_specs=[
            pl.BlockSpec((None, tile_h, wp, c4), lambda b, t, j: (b, t, 0, 0)),
            pl.BlockSpec((None, None, wp, c4), lambda b, t, j: (b, t, 0, 0)),
            pl.BlockSpec((4 * cin, tile_n), lambda b, t, j: (0, j)),
            pl.BlockSpec((2 * cin, tile_n), lambda b, t, j: (0, j)),
            pl.BlockSpec((2 * cin, tile_n), lambda b, t, j: (0, j)),
            pl.BlockSpec((cin, tile_n), lambda b, t, j: (0, j)),
            pl.BlockSpec((1, tile_n), lambda b, t, j: (0, j)),
        ],
        out_specs=pl.BlockSpec((None, None, m_all, tile_n),
                               lambda b, t, j: (b, t, 0, j)),
        compiler_params=pltpu.CompilerParams(
            dimension_semantics=("parallel", "parallel", "parallel"),
            vmem_limit_bytes=_VMEM_LIMIT),
    )(main, halo, w_a, w_b, w_c, w_d, bias_p)

    # TODO(synk): when chaining convs, consume this bf16 NHWC result directly and
    # skip the f32/NCHW conversion below (kept only to match the PyTorch module's
    # interface; it is one extra HBM pass).
    out = out.reshape(n, rows_main, w_out, cout_p)[:, :h_out, :, :cout]
    return jnp.transpose(out, (0, 3, 1, 2)).astype(jnp.float32)


def _reference(x_nchw, weight_oihw, gamma, beta, run_mean, run_var):
    y = jax.lax.conv_general_dilated(
        x_nchw, weight_oihw,
        window_strides=(STRIDE, STRIDE),
        padding=((PAD, PAD), (PAD, PAD)),
        dimension_numbers=("NCHW", "OIHW", "NCHW"))
    scale = gamma / jnp.sqrt(run_var + BN_EPS)
    bias = beta - run_mean * scale
    y = y * scale[None, :, None, None] + bias[None, :, None, None]
    return jnp.where(y > 0, y, LEAKY_SLOPE * y)


if __name__ == "__main__":
    key = jax.random.PRNGKey(0)
    k_x, k_w, k_g, k_b, k_m, k_v = jax.random.split(key, 6)

    N, C_IN, C_OUT, H, W = 2, 4, 8, 16, 16

    x = jax.random.normal(k_x, (N, C_IN, H, W), jnp.float32)
    weight = jax.random.normal(k_w, (C_OUT, C_IN, KH, KW), jnp.float32) * 0.1
    gamma = jax.random.uniform(k_g, (C_OUT,), jnp.float32, 0.5, 1.5)
    beta = jax.random.normal(k_b, (C_OUT,), jnp.float32) * 0.1
    run_mean = jax.random.normal(k_m, (C_OUT,), jnp.float32) * 0.1
    run_var = jax.random.uniform(k_v, (C_OUT,), jnp.float32, 0.5, 1.5)

    ref = _reference(x, weight, gamma, beta, run_mean, run_var)

    fwd = jax.jit(basic_conv_2, static_argnames=("tile_h",))
    # tile_h=4 -> 2 row tiles per image (exercises the halo path);
    # tile_h=None -> auto-sized single tile per image.
    for th in (4, None):
        out = jax.block_until_ready(
            fwd(x, weight, gamma, beta, run_mean, run_var, tile_h=th))
        assert out.shape == ref.shape, (out.shape, ref.shape)
        max_err = float(jnp.max(jnp.abs(out - ref)))
        # bf16 activations/weights/output (f32 accumulation) vs the f32 reference.
        assert jnp.allclose(out, ref, atol=5e-2, rtol=5e-2), (th, max_err)

    print("KERNEL_OK")
</pallas_src>

<mosaic_0001>
module attributes {stable_mosaic.version = 11 : i64} {
  func.func @_conv_bn_lrelu_kernel(%arg0: i32, %arg1: i32, %arg2: i32, %arg3: memref<1x4x9x16xbf16, #tpu.memory_space<vmem>>, %arg4: memref<1x1x9x16xbf16, #tpu.memory_space<vmem>>, %arg5: memref<16x128xbf16, #tpu.memory_space<vmem>>, %arg6: memref<8x128xbf16, #tpu.memory_space<vmem>>, %arg7: memref<8x128xbf16, #tpu.memory_space<vmem>>, %arg8: memref<4x128xbf16, #tpu.memory_space<vmem>>, %arg9: memref<1x128xf32, #tpu.memory_space<vmem>>, %arg10: memref<1x1x32x128xbf16, #tpu.memory_space<vmem>>) attributes {dimension_semantics = [#tpu.dimension_semantics<parallel>, #tpu.dimension_semantics<parallel>, #tpu.dimension_semantics<parallel>], iteration_bounds = array<i64: 2, 2, 1>, scalar_prefetch = 0 : i64, scratch_operands = 0 : i64, tpu.core_type = #tpu.core_type<tc>, window_params = [{transform_indices = @transform_0, window_bounds = array<i64: 1, 4, 9, 16>}, {transform_indices = @transform_1, window_bounds = array<i64: 1, 1, 9, 16>}, {transform_indices = @transform_2, window_bounds = array<i64: 16, 128>}, {transform_indices = @transform_3, window_bounds = array<i64: 8, 128>}, {transform_indices = @transform_4, window_bounds = array<i64: 8, 128>}, {transform_indices = @transform_5, window_bounds = array<i64: 4, 128>}, {transform_indices = @transform_6, window_bounds = array<i64: 1, 128>}, {transform_indices = @transform_7, window_bounds = array<i64: 1, 1, 32, 128>}]} {
    %c0 = arith.constant 0 : index
    %c0_0 = arith.constant 0 : index
    %0 = vector.load %arg9[%c0, %c0_0] : memref<1x128xf32, #tpu.memory_space<vmem>>, vector<1x128xf32>
    %c0_1 = arith.constant 0 : index
    %c0_2 = arith.constant 0 : index
    %c0_3 = arith.constant 0 : index
    %c0_4 = arith.constant 0 : index
    %1 = vector.load %arg3[%c0_1, %c0_2, %c0_3, %c0_4] : memref<1x4x9x16xbf16, #tpu.memory_space<vmem>>, vector<1x4x8x16xbf16>
    %2 = vector.shape_cast %1 : vector<1x4x8x16xbf16> to vector<4x8x16xbf16>
    %3 = vector.shape_cast %2 : vector<4x8x16xbf16> to vector<32x16xbf16>
    %c0_5 = arith.constant 0 : index
    %c0_6 = arith.constant 0 : index
    %c1 = arith.constant 1 : index
    %c0_7 = arith.constant 0 : index
    %4 = vector.load %arg3[%c0_5, %c0_6, %c1, %c0_7] : memref<1x4x9x16xbf16, #tpu.memory_space<vmem>>, vector<1x4x8x8xbf16>
    %5 = vector.shape_cast %4 : vector<1x4x8x8xbf16> to vector<4x8x8xbf16>
    %6 = vector.shape_cast %5 : vector<4x8x8xbf16> to vector<32x8xbf16>
    %c0_8 = arith.constant 0 : index
    %c0_9 = arith.constant 0 : index
    %7 = vector.load %arg5[%c0_8, %c0_9] : memref<16x128xbf16, #tpu.memory_space<vmem>>, vector<16x128xbf16>
    %cst = arith.constant dense<0.000000e+00> : vector<32x128xf32>
    %8 = tpu.matmul %3, %7, %cst {dimension_numbers = #tpu.dot_dimension_numbers<[1], [0], [0], [1], [0, 0, 1, 1], [], []>} : vector<32x16xbf16>, vector<16x128xbf16>, vector<32x128xf32> -> vector<32x128xf32>
    %c0_10 = arith.constant 0 : index
    %c0_11 = arith.constant 0 : index
    %9 = vector.load %arg6[%c0_10, %c0_11] : memref<8x128xbf16, #tpu.memory_space<vmem>>, vector<8x128xbf16>
    %cst_12 = arith.constant dense<0.000000e+00> : vector<32x128xf32>
    %10 = tpu.matmul %6, %9, %cst_12 {dimension_numbers = #tpu.dot_dimension_numbers<[1], [0], [0], [1], [0, 0, 1, 1], [], []>} : vector<32x8xbf16>, vector<8x128xbf16>, vector<32x128xf32> -> vector<32x128xf32>
    %11 = arith.addf %8, %10 : vector<32x128xf32>
    %c0_13 = arith.constant 0 : index
    %c1_14 = arith.constant 1 : index
    %c0_15 = arith.constant 0 : index
    %c4 = arith.constant 4 : index
    %12 = vector.load %arg3[%c0_13, %c1_14, %c0_15, %c4] : memref<1x4x9x16xbf16, #tpu.memory_space<vmem>>, vector<1x3x8x8xbf16>
    %13 = vector.shape_cast %12 : vector<1x3x8x8xbf16> to vector<3x8x8xbf16>
    %14 = vector.shape_cast %13 : vector<3x8x8xbf16> to vector<24x8xbf16>
    %c0_16 = arith.constant 0 : index
    %c1_17 = arith.constant 1 : index
    %c1_18 = arith.constant 1 : index
    %c4_19 = arith.constant 4 : index
    %15 = vector.load %arg3[%c0_16, %c1_17, %c1_18, %c4_19] : memref<1x4x9x16xbf16, #tpu.memory_space<vmem>>, vector<1x3x8x4xbf16>
    %16 = vector.shape_cast %15 : vector<1x3x8x4xbf16> to vector<3x8x4xbf16>
    %17 = vector.shape_cast %16 : vector<3x8x4xbf16> to vector<24x4xbf16>
    %18 = vector.extract_strided_slice %11 {offsets = [0, 0], sizes = [24, 128], strides = [1, 1]} : vector<32x128xf32> to vector<24x128xf32>
    %c0_20 = arith.constant 0 : index
    %c0_21 = arith.constant 0 : index
    %19 = vector.load %arg7[%c0_20, %c0_21] : memref<8x128xbf16, #tpu.memory_space<vmem>>, vector<8x128xbf16>
    %cst_22 = arith.constant dense<0.000000e+00> : vector<24x128xf32>
    %20 = tpu.matmul %14, %19, %cst_22 {dimension_numbers = #tpu.dot_dimension_numbers<[1], [0], [0], [1], [0, 0, 1, 1], [], []>} : vector<24x8xbf16>, vector<8x128xbf16>, vector<24x128xf32> -> vector<24x128xf32>
    %21 = arith.addf %18, %20 : vector<24x128xf32>
    %c0_23 = arith.constant 0 : index
    %c0_24 = arith.constant 0 : index
    %22 = vector.load %arg8[%c0_23, %c0_24] : memref<4x128xbf16, #tpu.memory_space<vmem>>, vector<4x128xbf16>
    %cst_25 = arith.constant dense<0.000000e+00> : vector<24x128xf32>
    %23 = tpu.matmul %17, %22, %cst_25 {dimension_numbers = #tpu.dot_dimension_numbers<[1], [0], [0], [1], [0, 0, 1, 1], [], []>} : vector<24x4xbf16>, vector<4x128xbf16>, vector<24x128xf32> -> vector<24x128xf32>
    %24 = arith.addf %21, %23 : vector<24x128xf32>
    %25 = vector.broadcast %0 : vector<1x128xf32> to vector<24x128xf32>
    %26 = arith.addf %24, %25 : vector<24x128xf32>
    %cst_26 = arith.constant 0.000000e+00 : f32
    %27 = vector.broadcast %cst_26 : f32 to vector<24x128xf32>
    %28 = arith.cmpf ogt, %26, %27 : vector<24x128xf32>
    %cst_27 = arith.constant 1.000000e-01 : f32
    %29 = vector.broadcast %cst_27 : f32 to vector<24x128xf32>
    %30 = arith.mulf %29, %26 : vector<24x128xf32>
    %31 = arith.select %28, %26, %30 : vector<24x128xi1>, vector<24x128xf32>
    %32 = arith.truncf %31 : vector<24x128xf32> to vector<24x128xbf16>
    %c0_28 = arith.constant 0 : index
    %c0_29 = arith.constant 0 : index
    %c0_30 = arith.constant 0 : index
    %c0_31 = arith.constant 0 : index
    %33 = vector.load %arg10[%c0_28, %c0_29, %c0_30, %c0_31] : memref<1x1x32x128xbf16, #tpu.memory_space<vmem>>, vector<1x1x24x128xbf16>
    %34 = vector.shape_cast %33 : vector<1x1x24x128xbf16> to vector<24x128xbf16>
    %35 = vector.shape_cast %32 : vector<24x128xbf16> to vector<1x1x24x128xbf16>
    tpu.vector_store %arg10[%c0_28, %c0_29, %c0_30, %c0_31], %35 {strides = array<i32>} : memref<1x1x32x128xbf16, #tpu.memory_space<vmem>>, vector<1x1x24x128xbf16>,
    %c0_32 = arith.constant 0 : index
    %c0_33 = arith.constant 0 : index
    %c0_34 = arith.constant 0 : index
    %c4_35 = arith.constant 4 : index
    %36 = vector.load %arg4[%c0_32, %c0_33, %c0_34, %c4_35] : memref<1x1x9x16xbf16, #tpu.memory_space<vmem>>, vector<1x1x8x8xbf16>
    %37 = vector.shape_cast %36 : vector<1x1x8x8xbf16> to vector<8x8xbf16>
    %c0_36 = arith.constant 0 : index
    %c0_37 = arith.constant 0 : index
    %c1_38 = arith.constant 1 : index
    %c4_39 = arith.constant 4 : index
    %38 = vector.load %arg4[%c0_36, %c0_37, %c1_38, %c4_39] : memref<1x1x9x16xbf16, #tpu.memory_space<vmem>>, vector<1x1x8x4xbf16>
    %39 = vector.shape_cast %38 : vector<1x1x8x4xbf16> to vector<8x4xbf16>
    %40 = vector.extract_strided_slice %11 {offsets = [24, 0], sizes = [8, 128], strides = [1, 1]} : vector<32x128xf32> to vector<8x128xf32>
    %c0_40 = arith.constant 0 : index
    %c0_41 = arith.constant 0 : index
    %41 = vector.load %arg7[%c0_40, %c0_41] : memref<8x128xbf16, #tpu.memory_space<vmem>>, vector<8x128xbf16>
    %cst_42 = arith.constant dense<0.000000e+00> : vector<8x128xf32>
    %42 = tpu.matmul %37, %41, %cst_42 {dimension_numbers = #tpu.dot_dimension_numbers<[1], [0], [0], [1], [0, 0, 1, 1], [], []>} : vector<8x8xbf16>, vector<8x128xbf16>, vector<8x128xf32> -> vector<8x128xf32>
    %43 = arith.addf %40, %42 : vector<8x128xf32>
    %c0_43 = arith.constant 0 : index
    %c0_44 = arith.constant 0 : index
    %44 = vector.load %arg8[%c0_43, %c0_44] : memref<4x128xbf16, #tpu.memory_space<vmem>>, vector<4x128xbf16>
    %cst_45 = arith.constant dense<0.000000e+00> : vector<8x128xf32>
    %45 = tpu.matmul %39, %44, %cst_45 {dimension_numbers = #tpu.dot_dimension_numbers<[1], [0], [0], [1], [0, 0, 1, 1], [], []>} : vector<8x4xbf16>, vector<4x128xbf16>, vector<8x128xf32> -> vector<8x128xf32>
    %46 = arith.addf %43, %45 : vector<8x128xf32>
    %47 = vector.broadcast %0 : vector<1x128xf32> to vector<8x128xf32>
    %48 = arith.addf %46, %47 : vector<8x128xf32>
    %cst_46 = arith.constant 0.000000e+00 : f32
    %49 = vector.broadcast %cst_46 : f32 to vector<8x128xf32>
    %50 = arith.cmpf ogt, %48, %49 : vector<8x128xf32>
    %cst_47 = arith.constant 1.000000e-01 : f32
    %51 = vector.broadcast %cst_47 : f32 to vector<8x128xf32>
    %52 = arith.mulf %51, %48 : vector<8x128xf32>
    %53 = arith.select %50, %48, %52 : vector<8x128xi1>, vector<8x128xf32>
    %54 = arith.truncf %53 : vector<8x128xf32> to vector<8x128xbf16>
    %c0_48 = arith.constant 0 : index
    %c0_49 = arith.constant 0 : index
    %c24 = arith.constant 24 : index
    %c0_50 = arith.constant 0 : index
    %55 = vector.load %arg10[%c0_48, %c0_49, %c24, %c0_50] : memref<1x1x32x128xbf16, #tpu.memory_space<vmem>>, vector<1x1x8x128xbf16>
    %56 = vector.shape_cast %55 : vector<1x1x8x128xbf16> to vector<8x128xbf16>
    %57 = vector.shape_cast %54 : vector<8x128xbf16> to vector<1x1x8x128xbf16>
    tpu.vector_store %arg10[%c0_48, %c0_49, %c24, %c0_50], %57 {strides = array<i32>} : memref<1x1x32x128xbf16, #tpu.memory_space<vmem>>, vector<1x1x8x128xbf16>,
    return
  }
  func.func @transform_0(%arg0: i32, %arg1: i32, %arg2: i32) -> (i32, i32, i32, i32) {
    %c0_i32 = arith.constant 0 : i32
    %c0_i32_0 = arith.constant 0 : i32
    %c0_i32_1 = arith.constant 0 : i32
    return %arg0, %arg1, %c0_i32, %c0_i32_0 : i32, i32, i32, i32
  }
  func.func @transform_1(%arg0: i32, %arg1: i32, %arg2: i32) -> (i32, i32, i32, i32) {
    %c0_i32 = arith.constant 0 : i32
    %c0_i32_0 = arith.constant 0 : i32
    %c0_i32_1 = arith.constant 0 : i32
    return %arg0, %arg1, %c0_i32, %c0_i32_0 : i32, i32, i32, i32
  }
  func.func @transform_2(%arg0: i32, %arg1: i32, %arg2: i32) -> (i32, i32) {
    %c0_i32 = arith.constant 0 : i32
    %c0_i32_0 = arith.constant 0 : i32
    return %c0_i32, %arg2 : i32, i32
  }
  func.func @transform_3(%arg0: i32, %arg1: i32, %arg2: i32) -> (i32, i32) {
    %c0_i32 = arith.constant 0 : i32
    %c0_i32_0 = arith.constant 0 : i32
    return %c0_i32, %arg2 : i32, i32
  }
  func.func @transform_4(%arg0: i32, %arg1: i32, %arg2: i32) -> (i32, i32) {
    %c0_i32 = arith.constant 0 : i32
    %c0_i32_0 = arith.constant 0 : i32
    return %c0_i32, %arg2 : i32, i32
  }
  func.func @transform_5(%arg0: i32, %arg1: i32, %arg2: i32) -> (i32, i32) {
    %c0_i32 = arith.constant 0 : i32
    %c0_i32_0 = arith.constant 0 : i32
    return %c0_i32, %arg2 : i32, i32
  }
  func.func @transform_6(%arg0: i32, %arg1: i32, %arg2: i32) -> (i32, i32) {
    %c0_i32 = arith.constant 0 : i32
    %c0_i32_0 = arith.constant 0 : i32
    return %c0_i32, %arg2 : i32, i32
  }
  func.func @transform_7(%arg0: i32, %arg1: i32, %arg2: i32) -> (i32, i32, i32, i32) {
    %c0_i32 = arith.constant 0 : i32
    %c0_i32_0 = arith.constant 0 : i32
    return %arg0, %arg1, %c0_i32, %arg2 : i32, i32, i32, i32
  }
}

</mosaic_0001>

<llo_original>
// kernel: basic_conv_2.1
$region0: #{basic_conv_2.1}
  #allocation0 [shape = 'u32[]', space=smem, size = 0x4, offset = 0x4, fixed_abs, tag = 'smem constant byte address 0x4 - core index']
  #allocation1 [shape = 'u32[72,128]{1,0:T(1,128)}', space=vmem, size = 0x9000, scoped, tag = 'internal scratch']
  %s0 = inlined_call_operand.vmem [shape: bf16[2,8,9,16], index: 0, kind: input, shape index: {}]
  %s1 = inlined_call_operand.vmem [shape: bf16[2,2,9,16], index: 1, kind: input, shape index: {}]
  %s2 = inlined_call_operand.vmem [shape: bf16[16,128], index: 2, kind: input, shape index: {}]
  %s3 = inlined_call_operand.vmem [shape: bf16[8,128], index: 3, kind: input, shape index: {}]
  %s4 = inlined_call_operand.vmem [shape: bf16[8,128], index: 4, kind: input, shape index: {}]
  %s5 = inlined_call_operand.vmem [shape: bf16[4,128], index: 5, kind: input, shape index: {}]
  %s6 = inlined_call_operand.vmem [shape: f32[1,128], index: 6, kind: input, shape index: {}]
  %s7 = inlined_call_operand.vmem [shape: bf16[2,2,32,128], index: 7, kind: output, shape index: {}]
  %s8 = sld [smem:[#allocation0]]
  $region61: #{basic_conv_2.1} parent=0
    _
  %s10 = ssub.s32 1, %s8
  %s11 = scalar_select 0, %s10, %s8
  loop: start=0, step=1, limit=6
  $region2: #{basic_conv_2.1} parent=0 // loop_pre_header
    _
  $region3: #{basic_conv_2.1} parent=0 // loop_header
    %s13 = sphi 0, %s17
    %p14 = scmp.ge.s32.totalorder %s13, 6
    %s20 = sphi 0, %s39
    %s21 = sphi 0, %s35
    %s22 = sphi 0, %s31
    %s23 = sphi 0, %s20
    %s24 = sphi 0, %s21
    %s25 = sphi 0, %s22
    %s26 = sphi 0, %s23
    %s27 = sphi 0, %s24
    %s28 = sphi 0, %s25
    %s44 = sphi 0, %s46
    %s47 = sphi 0, %s44
    %s48 = sphi 0, %s47
    %s64 = sphi 0, %s48
    %s72 = sphi 0, %s74
    %s75 = sphi 0, %s72
    %s76 = sphi 0, %s75
    %s92 = sphi 0, %s76
    %s98 = sphi 0, %s100
    %s101 = sphi 0, %s98
    %s102 = sphi 0, %s101
    %s118 = sphi 0, %s102
    %s124 = sphi 0, %s126
    %s127 = sphi 0, %s124
    %s128 = sphi 0, %s127
    %s144 = sphi 0, %s128
    %s150 = sphi 0, %s152
    %s153 = sphi 0, %s150
    %s154 = sphi 0, %s153
    %s170 = sphi 0, %s154
    %s176 = sphi 0, %s178
    %s179 = sphi 0, %s176
    %s180 = sphi 0, %s179
    %s196 = sphi 0, %s180
    %s202 = sphi 0, %s204
    %s205 = sphi 0, %s202
    %s206 = sphi 0, %s205
    %s222 = sphi 0, %s206
    %s232 = sphi 0, %s234
    %s235 = sphi 0, %s232
    %s236 = sphi 0, %s235
    %s252 = sphi 0, %s236
  $region4: #{basic_conv_2.1} parent=0 // loop_header_branch
    %16 = sbr.rel (%p14) target = $region8
  $region5: #{basic_conv_2.1} parent=0 // loop_body
    %s18 = ssub.s32 %s13, 1
    %s19 = ssub.s32 %s13, 2
    %s29 = sadd.s32 1, %s22
    %p30 = scmp.ge.s32.totalorder %s29, 1
    %s31 = scalar_select %p30, 0, %s29
    %s32 = sadd.s32 1, %s21
    %s33 = scalar_select %p30, %s32, %s21
    %p34 = scmp.ge.s32.totalorder %s33, 2
    %s35 = scalar_select %p34, 0, %s33
    %s36 = sadd.s32 1, %s20
    %s37 = scalar_select %p34, %s36, %s20
    %p38 = scmp.ge.s32.totalorder %s37, 2
    %s39 = scalar_select %p38, 0, %s37
    %s40 = ssub.s32 %s20, %s39
    %s41 = ssub.s32 %s21, %s35
    %s42 = sor.u32 %s40, %s41
    %p43 = scmp.eq.s32.totalorder %s42, 0
    %s45 = sadd.s32 %s44, 1
    %s46 = scalar_select %p43, %s44, %s45
    %p49 = pneg %p43
    %p50 = scmp.eq.s32.totalorder %s13, 3
    %p51 = por %p49, %p50
    %p52 = scmp.ne.s32.totalorder %s44, %s47
    %p53 = scmp.eq.s32.totalorder %s13, 0
    %p54 = por %p52, %p53
    %p55 = scmp.ne.s32.totalorder %s44, %s47
    %p56 = scmp.eq.s32.totalorder %s18, 3
    %p57 = por %p55, %p56
    %p58 = scmp.ne.s32.totalorder %s47, %s48
    %p59 = scmp.eq.s32.totalorder %s18, 0
    %p60 = por %p58, %p59
    %p61 = scmp.ne.s32.totalorder %s47, %s48
    %p62 = scmp.eq.s32.totalorder %s19, 3
    %p63 = por %p61, %p62
    %p65 = scmp.ne.s32.totalorder %s48, %s64
    %p66 = scmp.eq.s32.totalorder %s19, 0
    %p67 = por %p65, %p66
    %s68 = ssub.s32 %s20, %s39
    %s69 = ssub.s32 %s21, %s35
    %s70 = sor.u32 %s68, %s69
    %p71 = scmp.eq.s32.totalorder %s70, 0
    %s73 = sadd.s32 %s72, 1
    %s74 = scalar_select %p71, %s72, %s73
    %p77 = pneg %p71
    %p78 = scmp.eq.s32.totalorder %s13, 3
    %p79 = por %p77, %p78
    %p80 = scmp.ne.s32.totalorder %s72, %s75
    %p81 = scmp.eq.s32.totalorder %s13, 0
    %p82 = por %p80, %p81
    %p83 = scmp.ne.s32.totalorder %s72, %s75
    %p84 = scmp.eq.s32.totalorder %s18, 3
    %p85 = por %p83, %p84
    %p86 = scmp.ne.s32.totalorder %s75, %s76
    %p87 = scmp.eq.s32.totalorder %s18, 0
    %p88 = por %p86, %p87
    %p89 = scmp.ne.s32.totalorder %s75, %s76
    %p90 = scmp.eq.s32.totalorder %s19, 3
    %p91 = por %p89, %p90
    %p93 = scmp.ne.s32.totalorder %s76, %s92
    %p94 = scmp.eq.s32.totalorder %s19, 0
    %p95 = por %p93, %p94
    %s96 = ssub.s32 %s22, %s31
    %p97 = scmp.eq.s32.totalorder %s96, 0
    %s99 = sadd.s32 %s98, 1
    %s100 = scalar_select %p97, %s98, %s99
    %p103 = pneg %p97
    %p104 = scmp.eq.s32.totalorder %s13, 3
    %p105 = por %p103, %p104
    %p106 = scmp.ne.s32.totalorder %s98, %s101
    %p107 = scmp.eq.s32.totalorder %s13, 0
    %p108 = por %p106, %p107
    %p109 = scmp.ne.s32.totalorder %s98, %s101
    %p110 = scmp.eq.s32.totalorder %s18, 3
    %p111 = por %p109, %p110
    %p112 = scmp.ne.s32.totalorder %s101, %s102
    %p113 = scmp.eq.s32.totalorder %s18, 0
    %p114 = por %p112, %p113
    %p115 = scmp.ne.s32.totalorder %s101, %s102
    %p116 = scmp.eq.s32.totalorder %s19, 3
    %p117 = por %p115, %p116
    %p119 = scmp.ne.s32.totalorder %s102, %s118
    %p120 = scmp.eq.s32.totalorder %s19, 0
    %p121 = por %p119, %p120
    %s122 = ssub.s32 %s22, %s31
    %p123 = scmp.eq.s32.totalorder %s122, 0
    %s125 = sadd.s32 %s124, 1
    %s126 = scalar_select %p123, %s124, %s125
    %p129 = pneg %p123
    %p130 = scmp.eq.s32.totalorder %s13, 3
    %p131 = por %p129, %p130
    %p132 = scmp.ne.s32.totalorder %s124, %s127
    %p133 = scmp.eq.s32.totalorder %s13, 0
    %p134 = por %p132, %p133
    %p135 = scmp.ne.s32.totalorder %s124, %s127
    %p136 = scmp.eq.s32.totalorder %s18, 3
    %p137 = por %p135, %p136
    %p138 = scmp.ne.s32.totalorder %s127, %s128
    %p139 = scmp.eq.s32.totalorder %s18, 0
    %p140 = por %p138, %p139
    %p141 = scmp.ne.s32.totalorder %s127, %s128
    %p142 = scmp.eq.s32.totalorder %s19, 3
    %p143 = por %p141, %p142
    %p145 = scmp.ne.s32.totalorder %s128, %s144
    %p146 = scmp.eq.s32.totalorder %s19, 0
    %p147 = por %p145, %p146
    %s148 = ssub.s32 %s22, %s31
    %p149 = scmp.eq.s32.totalorder %s148, 0
    %s151 = sadd.s32 %s150, 1
    %s152 = scalar_select %p149, %s150, %s151
    %p155 = pneg %p149
    %p156 = scmp.eq.s32.totalorder %s13, 3
    %p157 = por %p155, %p156
    %p158 = scmp.ne.s32.totalorder %s150, %s153
    %p159 = scmp.eq.s32.totalorder %s13, 0
    %p160 = por %p158, %p159
    %p161 = scmp.ne.s32.totalorder %s150, %s153
    %p162 = scmp.eq.s32.totalorder %s18, 3
    %p163 = por %p161, %p162
    %p164 = scmp.ne.s32.totalorder %s153, %s154
    %p165 = scmp.eq.s32.totalorder %s18, 0
    %p166 = por %p164, %p165
    %p167 = scmp.ne.s32.totalorder %s153, %s154
    %p168 = scmp.eq.s32.totalorder %s19, 3
    %p169 = por %p167, %p168
    %p171 = scmp.ne.s32.totalorder %s154, %s170
    %p172 = scmp.eq.s32.totalorder %s19, 0
    %p173 = por %p171, %p172
    %s174 = ssub.s32 %s22, %s31
    %p175 = scmp.eq.s32.totalorder %s174, 0
    %s177 = sadd.s32 %s176, 1
    %s178 = scalar_select %p175, %s176, %s177
    %p181 = pneg %p175
    %p182 = scmp.eq.s32.totalorder %s13, 3
    %p183 = por %p181, %p182
    %p184 = scmp.ne.s32.totalorder %s176, %s179
    %p185 = scmp.eq.s32.totalorder %s13, 0
    %p186 = por %p184, %p185
    %p187 = scmp.ne.s32.totalorder %s176, %s179
    %p188 = scmp.eq.s32.totalorder %s18, 3
    %p189 = por %p187, %p188
    %p190 = scmp.ne.s32.totalorder %s179, %s180
    %p191 = scmp.eq.s32.totalorder %s18, 0
    %p192 = por %p190, %p191
    %p193 = scmp.ne.s32.totalorder %s179, %s180
    %p194 = scmp.eq.s32.totalorder %s19, 3
    %p195 = por %p193, %p194
    %p197 = scmp.ne.s32.totalorder %s180, %s196
    %p198 = scmp.eq.s32.totalorder %s19, 0
    %p199 = por %p197, %p198
    %s200 = ssub.s32 %s22, %s31
    %p201 = scmp.eq.s32.totalorder %s200, 0
    %s203 = sadd.s32 %s202, 1
    %s204 = scalar_select %p201, %s202, %s203
    %p207 = pneg %p201
    %p208 = scmp.eq.s32.totalorder %s13, 3
    %p209 = por %p207, %p208
    %p210 = scmp.ne.s32.totalorder %s202, %s205
    %p211 = scmp.eq.s32.totalorder %s13, 0
    %p212 = por %p210, %p211
    %p213 = scmp.ne.s32.totalorder %s202, %s205
    %p214 = scmp.eq.s32.totalorder %s18, 3
    %p215 = por %p213, %p214
    %p216 = scmp.ne.s32.totalorder %s205, %s206
    %p217 = scmp.eq.s32.totalorder %s18, 0
    %p218 = por %p216, %p217
    %p219 = scmp.ne.s32.totalorder %s205, %s206
    %p220 = scmp.eq.s32.totalorder %s19, 3
    %p221 = por %p219, %p220
    %p223 = scmp.ne.s32.totalorder %s206, %s222
    %p224 = scmp.eq.s32.totalorder %s19, 0
    %p225 = por %p223, %p224
    %s226 = ssub.s32 %s20, %s39
    %s227 = ssub.s32 %s21, %s35
    %s228 = sor.u32 %s226, %s227
    %s229 = ssub.s32 %s22, %s31
    %s230 = sor.u32 %s228, %s229
    %p231 = scmp.eq.s32.totalorder %s230, 0
    %s233 = sadd.s32 %s232, 1
    %s234 = scalar_select %p231, %s232, %s233
    %p237 = pneg %p231
    %p238 = scmp.eq.s32.totalorder %s13, 3
    %p239 = por %p237, %p238
    %p240 = scmp.ne.s32.totalorder %s232, %s235
    %p241 = scmp.eq.s32.totalorder %s13, 0
    %p242 = por %p240, %p241
    %p243 = scmp.ne.s32.totalorder %s232, %s235
    %p244 = scmp.eq.s32.totalorder %s18, 3
    %p245 = por %p243, %p244
    %p246 = scmp.ne.s32.totalorder %s235, %s236
    %p247 = scmp.eq.s32.totalorder %s18, 0
    %p248 = por %p246, %p247
    %p249 = scmp.ne.s32.totalorder %s235, %s236
    %p250 = scmp.eq.s32.totalorder %s19, 3
    %p251 = por %p249, %p250
    %p253 = scmp.ne.s32.totalorder %s236, %s252
    %p254 = scmp.eq.s32.totalorder %s19, 0
    %p255 = por %p253, %p254
    %p256 = scmp.le.s32.totalorder 1, %s13
    %p257 = scmp.lt.s32.totalorder %s13, 5
    %p258 = pnand %p256, %p257
    %p259 = pneg %p258
    // Predicated region
    $region9: #{basic_conv_2.1} parent=5 // pred_check
      _
    $region10: #{basic_conv_2.1} parent=5 // pred_check_branch
      %261 = sbr.rel (%p258) target = $region12
    $region11: #{basic_conv_2.1} parent=5 // pred_region
      %s262 = ssub.s32 %s13, 1
      // Predicated region
      $region13: #{basic_conv_2.1} parent=11 // pred_check
        %p263 = pneg %p114
      $region14: #{basic_conv_2.1} parent=11 // pred_check_branch
        %265 = sbr.rel (%p263) target = $region16
      $region15: #{basic_conv_2.1} parent=11 // pred_region
        %p266 = scmp.lt.s32.totalorder %s25, 0
        %s267 = scalar_select %p266, %s25, 0
        %s268 = smul.addr %s267, 4
        %s269 = scalar_lea.vmem %s2, %s268
      $region16: #{basic_conv_2.1} parent=11 // pred_fallthru
        _
      // Predicated region
      $region17: #{basic_conv_2.1} parent=11 // pred_check
        %p270 = pneg %p140
      $region18: #{basic_conv_2.1} parent=11 // pred_check_branch
        %272 = sbr.rel (%p270) target = $region20
      $region19: #{basic_conv_2.1} parent=11 // pred_region
        %p273 = scmp.lt.s32.totalorder %s25, 0
        %s274 = scalar_select %p273, %s25, 0
        %s275 = smul.addr %s274, 4
        %s276 = scalar_lea.vmem %s3, %s275
      $region20: #{basic_conv_2.1} parent=11 // pred_fallthru
        _
      // Predicated region
      $region21: #{basic_conv_2.1} parent=11 // pred_check
        %p277 = pneg %p166
      $region22: #{basic_conv_2.1} parent=11 // pred_check_branch
        %279 = sbr.rel (%p277) target = $region24
      $region23: #{basic_conv_2.1} parent=11 // pred_region
        %p280 = scmp.lt.s32.totalorder %s25, 0
        %s281 = scalar_select %p280, %s25, 0
        %s282 = smul.addr %s281, 4
        %s283 = scalar_lea.vmem %s4, %s282
      $region24: #{basic_conv_2.1} parent=11 // pred_fallthru
        _
      // Predicated region
      $region25: #{basic_conv_2.1} parent=11 // pred_check
        %p284 = pneg %p192
      $region26: #{basic_conv_2.1} parent=11 // pred_check_branch
        %286 = sbr.rel (%p284) target = $region28
      $region27: #{basic_conv_2.1} parent=11 // pred_region
        %p287 = scmp.lt.s32.totalorder %s25, 0
        %s288 = scalar_select %p287, %s25, 0
        %s289 = smul.addr %s288, 2
        %s290 = scalar_lea.vmem %s5, %s289
      $region28: #{basic_conv_2.1} parent=11 // pred_fallthru
        _
      // Predicated region
      $region29: #{basic_conv_2.1} parent=11 // pred_check
        %p291 = pneg %p218
      $region30: #{basic_conv_2.1} parent=11 // pred_check_branch
        %293 = sbr.rel (%p291) target = $region32
      $region31: #{basic_conv_2.1} parent=11 // pred_region
        %p294 = scmp.lt.s32.totalorder %s25, 0
        %s295 = scalar_select %p294, %s25, 0
        %s296 = scalar_lea.vmem %s6, %s295
      $region32: #{basic_conv_2.1} parent=11 // pred_fallthru
        _
    $region12: #{basic_conv_2.1} parent=5 // pred_fallthru
      _
    %p297 = scmp.lt.s32.totalorder %s13, 4
    // Predicated region
    $region33: #{basic_conv_2.1} parent=5 // pred_check
      %p298 = pneg %p297
    $region34: #{basic_conv_2.1} parent=5 // pred_check_branch
      %300 = sbr.rel (%p298) target = $region36
    $region35: #{basic_conv_2.1} parent=5 // pred_region
      // Predicated region
      $region37: #{basic_conv_2.1} parent=35 // pred_check
        %p301 = pneg %p54
      $region38: #{basic_conv_2.1} parent=35 // pred_check_branch
        %303 = sbr.rel (%p301) target = $region40
      $region39: #{basic_conv_2.1} parent=35 // pred_region
        %s304 = smul.u32 4, %s21
        %p305 = scmp.lt.s32.totalorder %s20, 1
        %s306 = scalar_select %p305, %s20, 1
        %p307 = scmp.lt.s32.totalorder %s304, 7
        %s308 = scalar_select %p307, %s304, 7
        %s309 = smul.addr %s308, 2
        %s310 = smul.addr %s306, 16
        %s311 = sadd.s32 %s309, %s310
        %s312 = smul.addr %s311, 4
        %s313 = scalar_lea.vmem %s0, %s312
        %s314 = smul.u32 4, %s21
      $region40: #{basic_conv_2.1} parent=35 // pred_fallthru
        _
      // Predicated region
      $region41: #{basic_conv_2.1} parent=35 // pred_check
        %p315 = pneg %p82
      $region42: #{basic_conv_2.1} parent=35 // pred_check_branch
        %317 = sbr.rel (%p315) target = $region44
      $region43: #{basic_conv_2.1} parent=35 // pred_region
        %p318 = scmp.lt.s32.totalorder %s20, 1
        %s319 = scalar_select %p318, %s20, 1
        %p320 = scmp.lt.s32.totalorder %s21, 1
        %s321 = scalar_select %p320, %s21, 1
        %s322 = smul.addr %s321, 2
        %s323 = smul.addr %s319, 4
        %s324 = sadd.s32 %s322, %s323
        %s325 = smul.addr %s324, 4
        %s326 = scalar_lea.vmem %s1, %s325
      $region44: #{basic_conv_2.1} parent=35 // pred_fallthru
        _
    $region36: #{basic_conv_2.1} parent=5 // pred_fallthru
      _
    %p327 = scmp.le.s32.totalorder 1, %s13
    %p328 = scmp.lt.s32.totalorder %s13, 5
    %p329 = pnand %p327, %p328
    %p330 = pneg %p329
    // Predicated region
    $region45: #{basic_conv_2.1} parent=5 // pred_check
      _
    $region46: #{basic_conv_2.1} parent=5 // pred_check_branch
      %332 = sbr.rel (%p329) target = $region48
    $region47: #{basic_conv_2.1} parent=5 // pred_region
      %s333 = ssub.s32 %s13, 1
      %s334 = smul.u32 4, %s24
      %p335 = scmp.lt.s32.totalorder %s23, 1
      %s336 = scalar_select %p335, %s23, 1
      %p337 = scmp.lt.s32.totalorder %s334, 7
      %s338 = scalar_select %p337, %s334, 7
      %s339 = smul.addr %s338, 2
      %s340 = smul.addr %s336, 16
      %s341 = sadd.s32 %s339, %s340
      %s342 = smul.addr %s341, 4
      %s343 = scalar_lea.vmem %s0, %s342
      %p344 = pneg %p60
      %p345 = pneg %p57
      %p346 = scmp.lt.s32.totalorder %s23, 1
      %s347 = scalar_select %p346, %s23, 1
      %p348 = scmp.lt.s32.totalorder %s24, 1
      %s349 = scalar_select %p348, %s24, 1
      %s350 = smul.addr %s349, 2
      %s351 = smul.addr %s347, 4
      %s352 = sadd.s32 %s350, %s351
      %s353 = smul.addr %s352, 4
      %s354 = scalar_lea.vmem %s1, %s353
      %p355 = pneg %p88
      %p356 = pneg %p85
      %p357 = scmp.lt.s32.totalorder %s25, 0
      %s358 = scalar_select %p357, %s25, 0
      %s359 = smul.addr %s358, 4
      %s360 = scalar_lea.vmem %s2, %s359
      %p361 = pneg %p114
      %p362 = pneg %p111
      %p363 = scmp.lt.s32.totalorder %s25, 0
      %s364 = scalar_select %p363, %s25, 0
      %s365 = smul.addr %s364, 4
      %s366 = scalar_lea.vmem %s3, %s365
      %p367 = pneg %p140
      %p368 = pneg %p137
      %p369 = scmp.lt.s32.totalorder %s25, 0
      %s370 = scalar_select %p369, %s25, 0
      %s371 = smul.addr %s370, 4
      %s372 = scalar_lea.vmem %s4, %s371
      %p373 = pneg %p166
      %p374 = pneg %p163
      %p375 = scmp.lt.s32.totalorder %s25, 0
      %s376 = scalar_select %p375, %s25, 0
      %s377 = smul.addr %s376, 2
      %s378 = scalar_lea.vmem %s5, %s377
      %p379 = pneg %p192
      %p380 = pneg %p189
      %p381 = scmp.lt.s32.totalorder %s25, 0
      %s382 = scalar_select %p381, %s25, 0
      %s383 = scalar_lea.vmem %s6, %s382
      %p384 = pneg %p218
      %p385 = pneg %p215
      %p386 = pneg %p248
      %p387 = pneg %p245
      %p388 = scmp.lt.s32.totalorder %s23, 1
      %s389 = scalar_select %p388, %s23, 1
      %p390 = scmp.lt.s32.totalorder %s24, 1
      %s391 = scalar_select %p390, %s24, 1
      %p392 = scmp.lt.s32.totalorder %s25, 0
      %s393 = scalar_select %p392, %s25, 0
      %s394 = smul.addr %s391, 4
      %s395 = sadd.s32 %s393, %s394
      %s396 = smul.addr %s389, 8
      %s397 = sadd.s32 %s395, %s396
      %s398 = smul.addr %s397, 4
      %s399 = scalar_lea.vmem %s7, %s398
      %s400 = smul.u32 4, %s24
      %p401 = scmp.lt.s32.totalorder %s23, 1
      %s402 = scalar_select %p401, %s23, 1
      %p403 = scmp.lt.s32.totalorder %s400, 7
      %s404 = scalar_select %p403, %s400, 7
      %s405 = smul.addr %s404, 2
      %s406 = smul.addr %s402, 16
      %s407 = sadd.s32 %s405, %s406
      %s408 = smul.addr %s407, 4
      %s409 = scalar_lea.vmem %s0, %s408
      %s410 = smul.u32 4, %s24
      %p411 = scmp.lt.s32.totalorder %s23, 1
      %s412 = scalar_select %p411, %s23, 1
      %p413 = scmp.lt.s32.totalorder %s24, 1
      %s414 = scalar_select %p413, %s24, 1
      %s415 = smul.addr %s414, 2
      %s416 = smul.addr %s412, 4
      %s417 = sadd.s32 %s415, %s416
      %s418 = smul.addr %s417, 4
      %s419 = scalar_lea.vmem %s1, %s418
      %p420 = scmp.lt.s32.totalorder %s25, 0
      %s421 = scalar_select %p420, %s25, 0
      %s422 = smul.addr %s421, 4
      %s423 = scalar_lea.vmem %s2, %s422
      %p424 = scmp.lt.s32.totalorder %s25, 0
      %s425 = scalar_select %p424, %s25, 0
      %s426 = smul.addr %s425, 4
      %s427 = scalar_lea.vmem %s3, %s426
      %p428 = scmp.lt.s32.totalorder %s25, 0
      %s429 = scalar_select %p428, %s25, 0
      %s430 = smul.addr %s429, 4
      %s431 = scalar_lea.vmem %s4, %s430
      %p432 = scmp.lt.s32.totalorder %s25, 0
      %s433 = scalar_select %p432, %s25, 0
      %s434 = smul.addr %s433, 2
      %s435 = scalar_lea.vmem %s5, %s434
      %p436 = scmp.lt.s32.totalorder %s25, 0
      %s437 = scalar_select %p436, %s25, 0
      %s438 = scalar_lea.vmem %s6, %s437
      %p439 = scmp.lt.s32.totalorder %s23, 1
      %s440 = scalar_select %p439, %s23, 1
      %p441 = scmp.lt.s32.totalorder %s24, 1
      %s442 = scalar_select %p441, %s24, 1
      %p443 = scmp.lt.s32.totalorder %s25, 0
      %s444 = scalar_select %p443, %s25, 0
      %s445 = smul.addr %s442, 4
      %s446 = sadd.s32 %s444, %s445
      %s447 = smul.addr %s440, 8
      %s448 = sadd.s32 %s446, %s447
      %s449 = smul.addr %s448, 4
      %s450 = scalar_lea.vmem %s7, %s449
      %v452 = vld [vmem:[%s438] sm:$0x1]
      %v453 = vld [vmem:[%s409] sm:$0xf]
      %v454 = vld [vmem:[%s409 + $0x8] sm:$0xf]
      %v455 = vld [vmem:[%s409 + $0x10] sm:$0xf]
      %v456 = vld [vmem:[%s409 + $0x18] sm:$0xf]
      %v457 = vld [vmem:[%s409 + $0x4] sm:$0x1]
      %v458 = vld [vmem:[%s409 + $0xc] sm:$0x1]
      %v459 = vld [vmem:[%s409 + $0x14] sm:$0x1]
      %v460 = vld [vmem:[%s409 + $0x1c] sm:$0x1]
      %vm461 = vsmask.f32 3328
      %vm462 = vsmask.f32 7440
      %vm463 = vmor %vm461, %vm462
      %v465 = vshrl.u32 %v453, 16
      %v467 = vrot.slane %v465, 4
      %v468 = vshll.u32 %v453, 16
      %v470 = vrot.slane %v468, 5
      %v471 = vor.u32 %v467, %v470
      %v472 = vrot.slane %v471, 4
      %v474 = vshll.u32 %v457, 16
      %v476 = vrot.slane %v474, 5
      %v477 = vsel %vm463, %v472, %v476
      %v479 = vshrl.u32 %v454, 16
      %v481 = vrot.slane %v479, 4
      %v482 = vshll.u32 %v454, 16
      %v484 = vrot.slane %v482, 5
      %v485 = vor.u32 %v481, %v484
      %v486 = vrot.slane %v485, 4
      %v488 = vshll.u32 %v458, 16
      %v490 = vrot.slane %v488, 5
      %v491 = vsel %vm463, %v486, %v490
      %v493 = vshrl.u32 %v455, 16
      %v495 = vrot.slane %v493, 4
      %v496 = vshll.u32 %v455, 16
      %v498 = vrot.slane %v496, 5
      %v499 = vor.u32 %v495, %v498
      %v500 = vrot.slane %v499, 4
      %v502 = vshll.u32 %v459, 16
      %v504 = vrot.slane %v502, 5
      %v505 = vsel %vm463, %v500, %v504
      %v507 = vshrl.u32 %v456, 16
      %v509 = vrot.slane %v507, 4
      %v510 = vshll.u32 %v456, 16
      %v512 = vrot.slane %v510, 5
      %v513 = vor.u32 %v509, %v512
      %v514 = vrot.slane %v513, 4
      %v516 = vshll.u32 %v460, 16
      %v518 = vrot.slane %v516, 5
      %v519 = vsel %vm463, %v514, %v518
      %v520 = vld [vmem:[%s423] sm:$0xf]
      %v521 = vld [vmem:[%s423 + $0x4] sm:$0xf]
      %v522 = vld [vmem:[%s427] sm:$0xf]
      %v523 = vunpack.c.l.b16 %v477
      %v524 = vunpack.c.l.b16 %v491
      %v525 = vunpack.c.l.b16 %v505
      %v526 = vunpack.c.l.b16 %v519
      %v527 = vpack.c.b16 %v524, %v523
      %v528 = vpack.c.b16 %v526, %v525
      %vm529 = vcmask 64512
      %v531 = vsel %vm529, %v527, 0
      %v534 = vsel %vm529, %v528, 0
      %vm536 = vcmask 1043456
      %v538 = vsel %vm536, %v522, 0
      %540 = vmatpush.bf16.msra.mxu0 0
      %541 = vmatpush.bf16.msra.mxu0 0
      %542 = vmatpush.bf16.msra.mxu0 0
      %543 = vmatpush.bf16.msra.mxu0 0
      %544 = vmatpush.bf16.msra.mxu0 0
      %545 = vmatpush.bf16.msra.mxu0 0
      %546 = vmatpush.bf16.msra.mxu0 0
      %547 = vmatpush.bf16.msra.mxu0 %v538
      %548 = vmatmul.bf16.gmra.mxu0 %v531
      %v549 = vpop.f32.mrf.mxu0
      %v550 = vadd.f32 0.0, %v549
      %v551 = vpop.f32.mrf.mxu0
      %v552 = vadd.f32 0.0, %v551
      %553 = vmatmul.bf16.gmra.mxu0 %v534
      %v554 = vpop.f32.mrf.mxu0
      %v555 = vadd.f32 0.0, %v554
      %v556 = vpop.f32.mrf.mxu0
      %v557 = vadd.f32 0.0, %v556
      %558 = vdwg.mxu0
      %v563 = vunpack.c.l.b16 %v453
      %v564 = vunpack.c.l.b16 %v454
      %v565 = vunpack.c.l.b16 %v455
      %v566 = vunpack.c.l.b16 %v456
      %v567 = vpack.c.b16 %v564, %v563
      %v568 = vpack.c.b16 %v566, %v565
      %v571 = vunpack.c.l.b16 %v520
      %v572 = vunpack.c.l.b16 %v521
      %v573 = vpack.c.b16 %v572, %v571
      %vm575 = vcmask 130048
      %v577 = vsel %vm575, %v567, 0
      %v580 = vsel %vm575, %v568, 0
      %582 = vmatpush.bf16.msra.mxu0 0
      %583 = vmatpush.bf16.msra.mxu0 0
      %584 = vmatpush.bf16.msra.mxu0 0
      %585 = vmatpush.bf16.msra.mxu0 0
      %586 = vmatpush.bf16.msra.mxu0 0
      %587 = vmatpush.bf16.msra.mxu0 0
      %588 = vmatpush.bf16.msra.mxu0 0
      %589 = vmatpush.bf16.msra.mxu0 %v573
      %590 = vmatmul.bf16.gmra.mxu0 %v577
      %v591 = vpop.f32.mrf.mxu0
      %v592 = vadd.f32 %v550, %v591
      %v593 = vpop.f32.mrf.mxu0
      %v594 = vadd.f32 %v552, %v593
      %595 = vmatmul.bf16.gmra.mxu0 %v580
      %v596 = vpop.f32.mrf.mxu0
      %v597 = vadd.f32 %v555, %v596
      %v598 = vpop.f32.mrf.mxu0
      %v599 = vadd.f32 %v557, %v598
      %600 = vdwg.mxu0
      %s601 = scalar_lea.vmem %s409, 8
      %v602 = vld [vmem:[%s601] sm:$0xf]
      %v603 = vld [vmem:[%s601 + $0x8] sm:$0xf]
      %v604 = vld [vmem:[%s601 + $0x10] sm:$0xf]
      %v605 = vld [vmem:[%s601 + $0x4] sm:$0x1]
      %v606 = vld [vmem:[%s601 + $0xc] sm:$0x1]
      %v607 = vld [vmem:[%s601 + $0x14] sm:$0x1]
      %v609 = vshrl.u32 %v602, 16
      %v611 = vrot.slane %v609, 4
      %v612 = vshll.u32 %v602, 16
      %v614 = vrot.slane %v612, 5
      %v615 = vor.u32 %v611, %v614
      %v616 = vrot.slane %v615, 4
      %v618 = vshll.u32 %v605, 16
      %v620 = vrot.slane %v618, 5
      %v621 = vsel %vm463, %v616, %v620
      %v623 = vshrl.u32 %v603, 16
      %v625 = vrot.slane %v623, 4
      %v626 = vshll.u32 %v603, 16
      %v628 = vrot.slane %v626, 5
      %v629 = vor.u32 %v625, %v628
      %v630 = vrot.slane %v629, 4
      %v632 = vshll.u32 %v606, 16
      %v634 = vrot.slane %v632, 5
      %v635 = vsel %vm463, %v630, %v634
      %v637 = vshrl.u32 %v604, 16
      %v639 = vrot.slane %v637, 4
      %v640 = vshll.u32 %v604, 16
      %v642 = vrot.slane %v640, 5
      %v643 = vor.u32 %v639, %v642
      %v644 = vrot.slane %v643, 4
      %v646 = vshll.u32 %v607, 16
      %v648 = vrot.slane %v646, 5
      %v649 = vsel %vm463, %v644, %v648
      %v650 = vld [vmem:[%s431] sm:$0xf]
      %v654 = vunpack.c.l.b16 %v602
      %v655 = vunpack.c.l.b16 %v603
      %v656 = vunpack.c.l.b16 %v604
      %v657 = vpack.c.b16 %v655, %v654
      %v658 = vpack.c.b16 %v656, %v656
      %659 = vrot.lane.b32.xlu0 %v657, 124
      %v660 = vpop.permute.xlu0 %659
      %661 = vrot.lane.b32.xlu0 %v658, 124
      %v662 = vpop.permute.xlu0 %661
      %v664 = vsel %vm529, %v660, 0
      %v667 = vsel %vm529, %v662, 0
      %v670 = vsel %vm536, %v650, 0
      %672 = vmatpush.bf16.msra.mxu0 0
      %673 = vmatpush.bf16.msra.mxu0 0
      %674 = vmatpush.bf16.msra.mxu0 0
      %675 = vmatpush.bf16.msra.mxu0 0
      %676 = vmatpush.bf16.msra.mxu0 0
      %677 = vmatpush.bf16.msra.mxu0 0
      %678 = vmatpush.bf16.msra.mxu0 0
      %679 = vmatpush.bf16.msra.mxu0 %v670
      %680 = vmatmul.bf16.gmra.mxu0 %v664
      %v681 = vpop.f32.mrf.mxu0
      %v682 = vadd.f32 0.0, %v681
      %v683 = vpop.f32.mrf.mxu0
      %v684 = vadd.f32 0.0, %v683
      %685 = vmatmul.bf16.gmra.mxu0 %v667
      %v686 = vpop.f32.mrf.mxu0
      %v687 = vadd.f32 0.0, %v686
      %v688 = vpop.f32.mrf.mxu0
      %689 = vdwg.mxu0
      %v690 = vadd.f32 %v592, %v682
      %v691 = vadd.f32 %v594, %v684
      %v692 = vadd.f32 %v597, %v687
      %v693 = vld [vmem:[%s435] sm:$0x3]
      %v694 = vunpack.c.l.b16 %v621
      %v695 = vunpack.c.l.b16 %v635
      %v696 = vunpack.c.l.b16 %v649
      %v697 = vpack.c.b16 %v695, %v694
      %v698 = vpack.c.b16 %v696, %v696
      %699 = vrot.lane.b32.xlu0 %v697, 124
      %v700 = vpop.permute.xlu0 %699
      %701 = vrot.lane.b32.xlu0 %v698, 124
      %v702 = vpop.permute.xlu0 %701
      %vm703 = vcmask 31744
      %v705 = vsel %vm703, %v700, 0
      %v708 = vsel %vm703, %v702, 0
      %vm710 = vcmask 1041408
      %v712 = vsel %vm710, %v693, 0
      %714 = vmatpush.bf16.msra.mxu0 0
      %715 = vmatpush.bf16.msra.mxu0 0
      %716 = vmatpush.bf16.msra.mxu0 0
      %717 = vmatpush.bf16.msra.mxu0 0
      %718 = vmatpush.bf16.msra.mxu0 0
      %719 = vmatpush.bf16.msra.mxu0 0
      %720 = vmatpush.bf16.msra.mxu0 0
      %721 = vmatpush.bf16.msra.mxu0 %v712
      %722 = vmatmul.bf16.gmra.mxu0 %v705
      %v723 = vpop.f32.mrf.mxu0
      %v724 = vadd.f32 0.0, %v723
      %v725 = vpop.f32.mrf.mxu0
      %v726 = vadd.f32 0.0, %v725
      %727 = vmatmul.bf16.gmra.mxu0 %v708
      %v728 = vpop.f32.mrf.mxu0
      %v729 = vadd.f32 0.0, %v728
      %v730 = vpop.f32.mrf.mxu0
      %731 = vdwg.mxu0
      %v732 = vadd.f32 %v690, %v724
      %v733 = vadd.f32 %v691, %v726
      %v734 = vadd.f32 %v692, %v729
      %v736 = vperm.slane %v452, 0
      %v738 = vadd.f32 %v732, %v736
      %v739 = vadd.f32 %v733, %v736
      %v740 = vadd.f32 %v734, %v736
      %vm741 = vcmp.gt.f32.partialorder %v738, 0.0
      %vm742 = vcmp.gt.f32.partialorder %v739, 0.0
      %vm743 = vcmp.gt.f32.partialorder %v740, 0.0
      %v744 = vmul.f32 %v738, 0.1
      %v745 = vmul.f32 %v739, 0.1
      %v746 = vmul.f32 %v740, 0.1
      %v747 = vsel %vm741, %v738, %v744
      %v748 = vsel %vm742, %v739, %v745
      %v749 = vsel %vm743, %v740, %v746
      %v750 = vpack.c.bf16 %v747, %v747
      %v751 = vpack.c.bf16 %v748, %v748
      %v752 = vpack.c.bf16 %v749, %v749
      %753 = vst [vmem:[%s450] sm:$0xf] %v750
      %754 = vst [vmem:[%s450 + $0x4] sm:$0xf] %v751
      %755 = vst [vmem:[%s450 + $0x8] sm:$0xf] %v752
      %v756 = vld [vmem:[%s419] sm:$0xf]
      %v757 = vld [vmem:[%s419 + $0x4] sm:$0x1]
      %v758 = vld [vmem:[%s431] sm:$0xf]
      %v760 = vunpack.c.l.b16 %v756
      %v761 = vpack.c.b16 %v760, %v760
      %762 = vrot.lane.b32.xlu0 %v761, 124
      %v763 = vpop.permute.xlu0 %762
      %v765 = vsel %vm529, %v763, 0
      %v768 = vsel %vm536, %v758, 0
      %770 = vmatpush.bf16.msra.mxu0 0
      %771 = vmatpush.bf16.msra.mxu0 0
      %772 = vmatpush.bf16.msra.mxu0 0
      %773 = vmatpush.bf16.msra.mxu0 0
      %774 = vmatpush.bf16.msra.mxu0 0
      %775 = vmatpush.bf16.msra.mxu0 0
      %776 = vmatpush.bf16.msra.mxu0 0
      %777 = vmatpush.bf16.msra.mxu0 %v768
      %778 = vmatmul.bf16.gmra.mxu0 %v765
      %v779 = vpop.f32.mrf.mxu0
      %v780 = vadd.f32 0.0, %v779
      %v781 = vpop.f32.mrf.mxu0
      %782 = vdwg.mxu0
      %v783 = vadd.f32 %v599, %v780
      %v784 = vld [vmem:[%s435] sm:$0x3]
      %v786 = vunpack.c.l.b16 %v757
      %v787 = vpack.c.b16 %v786, %v760
      %v789 = vshrl.u32 %v787, 16
      %v791 = vshll.u32 %v787, 16
      %v793 = vrot.slane %v791, 1
      %v794 = vor.u32 %v789, %v793
      %795 = vrot.lane.b32.xlu0 %v794, 124
      %v796 = vpop.permute.xlu0 %795
      %v798 = vsel %vm703, %v796, 0
      %v801 = vsel %vm710, %v784, 0
      %803 = vmatpush.bf16.msra.mxu0 0
      %804 = vmatpush.bf16.msra.mxu0 0
      %805 = vmatpush.bf16.msra.mxu0 0
      %806 = vmatpush.bf16.msra.mxu0 0
      %807 = vmatpush.bf16.msra.mxu0 0
      %808 = vmatpush.bf16.msra.mxu0 0
      %809 = vmatpush.bf16.msra.mxu0 0
      %810 = vmatpush.bf16.msra.mxu0 %v801
      %811 = vmatmul.bf16.gmra.mxu0 %v798
      %v812 = vpop.f32.mrf.mxu0
      %v813 = vadd.f32 0.0, %v812
      %v814 = vpop.f32.mrf.mxu0
      %815 = vdwg.mxu0
      %v816 = vadd.f32 %v783, %v813
      %v817 = vadd.f32 %v816, %v736
      %vm818 = vcmp.gt.f32.partialorder %v817, 0.0
      %v819 = vmul.f32 %v817, 0.1
      %v820 = vsel %vm818, %v817, %v819
      %v821 = vpack.c.bf16 %v820, %v820
      %822 = vst [vmem:[%s450 + $0xc] sm:$0xf] %v821
      %p823 = scmp.lt.s32.totalorder %s23, 1
      %s824 = scalar_select %p823, %s23, 1
      %p825 = scmp.lt.s32.totalorder %s24, 1
      %s826 = scalar_select %p825, %s24, 1
      %p827 = scmp.lt.s32.totalorder %s25, 0
      %s828 = scalar_select %p827, %s25, 0
      %s829 = smul.addr %s826, 4
      %s830 = sadd.s32 %s828, %s829
      %s831 = smul.addr %s824, 8
      %s832 = sadd.s32 %s830, %s831
      %s833 = smul.addr %s832, 4
      %s834 = scalar_lea.vmem %s7, %s833
      // Predicated region
      $region49: #{basic_conv_2.1} parent=47 // pred_check
        %p835 = pneg %p245
      $region50: #{basic_conv_2.1} parent=47 // pred_check_branch
        %837 = sbr.rel (%p835) target = $region52
      $region51: #{basic_conv_2.1} parent=47 // pred_region
        _
      $region52: #{basic_conv_2.1} parent=47 // pred_fallthru
        _
    $region48: #{basic_conv_2.1} parent=5 // pred_fallthru
      _
    %p838 = scmp.le.s32.totalorder 2, %s13
    // Predicated region
    $region53: #{basic_conv_2.1} parent=5 // pred_check
      %p839 = pneg %p838
    $region54: #{basic_conv_2.1} parent=5 // pred_check_branch
      %841 = sbr.rel (%p839) target = $region56
    $region55: #{basic_conv_2.1} parent=5 // pred_region
      %s842 = ssub.s32 %s13, 2
      // Predicated region
      $region57: #{basic_conv_2.1} parent=55 // pred_check
        %p843 = pneg %p251
      $region58: #{basic_conv_2.1} parent=55 // pred_check_branch
        %845 = sbr.rel (%p843) target = $region60
      $region59: #{basic_conv_2.1} parent=55 // pred_region
        %p846 = scmp.lt.s32.totalorder %s26, 1
        %s847 = scalar_select %p846, %s26, 1
        %p848 = scmp.lt.s32.totalorder %s27, 1
        %s849 = scalar_select %p848, %s27, 1
        %p850 = scmp.lt.s32.totalorder %s28, 0
        %s851 = scalar_select %p850, %s28, 0
        %s852 = smul.addr %s849, 4
        %s853 = sadd.s32 %s851, %s852
        %s854 = smul.addr %s847, 8
        %s855 = sadd.s32 %s853, %s854
        %s856 = smul.addr %s855, 4
        %s857 = scalar_lea.vmem %s7, %s856
      $region60: #{basic_conv_2.1} parent=55 // pred_fallthru
        _
    $region56: #{basic_conv_2.1} parent=5 // pred_fallthru
      _
  $region6: #{basic_conv_2.1} parent=0 // loop_footer
    %s17 = sadd.s32 1, %s13
  $region7: #{basic_conv_2.1} parent=0 // loop_footer_branch
    %12 = sbr.rel target = $region3
  $region8: #{basic_conv_2.1} parent=0 // loop_exit
    _

</llo_original>
